<compile_context>
chip_gen: v5e
topology: v5e:2x2
jax: 0.10.0
libtpu: 0.0.40
codegen_flags: <defaults>
</compile_context>

<pallas_src>
import functools

import jax
import jax.numpy as jnp
import numpy as np
from jax.experimental import pallas as pl
from jax.experimental.pallas import tpu as pltpu


def _chamfer_kernel(a1_ref, a2_ref, out_ref, *, bb, use_mxu):
    """One grid step: `bb` batch elements.

    a1_ref: (bb, F, N1)  -- array1, transposed so points are in lanes
    a2_ref: (bb, N2, F)  -- array2, original layout
    out_ref: (bb, 128)   -- per-batch chamfer value broadcast across lanes
    """
    rows = []
    for lb in range(bb):  # bb is small and static -> unrolled
        a1 = a1_ref[lb].astype(jnp.float32)  # (F, N1), point axis in lanes
        a2 = a2_ref[lb].astype(jnp.float32)  # (N2, F)
        nf, n1 = a1.shape
        n2 = a2.shape[0]

        if use_mxu:
            # MXU formulation for large N: d = |a2|^2 + |a1|^2 - 2 * a2 @ a1
            cross = jnp.dot(a2, a1, preferred_element_type=jnp.float32)  # (N2, N1)
            sq2 = jnp.sum(a2 * a2, axis=1, keepdims=True)                # (N2, 1)
            sq1 = jnp.sum(a1 * a1, axis=0, keepdims=True)                # (1, N1)
            d = jnp.maximum(sq2 + sq1 - 2.0 * cross, 0.0)
        else:
            # Elementwise path (small N / tiny F): same accumulation order as
            # torch's (e1 - e2)^2 then sum over features.
            d = jnp.zeros((n2, n1), dtype=jnp.float32)
            for f in range(nf):
                # (N2, 1) lane-broadcast minus (1, N1) sublane-broadcast.
                diff = a2[:, f : f + 1] - a1[f : f + 1, :]
                d = d + diff * diff

        # array2samples_distance(array1, array2): per sample of array2 (rows),
        # min over array1 points (lanes), then mean.
        av1 = jnp.mean(jnp.min(d, axis=1, keepdims=True))
        # Roles swapped: distance is symmetric, reduce the other axis.
        av2 = jnp.mean(jnp.min(d, axis=0, keepdims=True))

        val = 0.5 * av1 + 0.5 * av2  # raw per-batch value; scaled in wrapper
        rows.append(jnp.full((1, 128), val, dtype=jnp.float32))

    block = rows[0] if bb == 1 else jnp.concatenate(rows, axis=0)
    out_ref[...] = block  # single lane-dense store for the whole block


def point_loss(array1, array2):
    """Pallas equivalent of PointLoss.forward (chamfer_distance_numpy)."""
    assert array1.shape == array2.shape
    B, N, F = array1.shape

    # Lane-major layout for array1: (B, F, N) puts the point axis in lanes.
    a1_t = jnp.transpose(array1, (0, 2, 1))
    a2 = array2

    # Batch blocking: whole batch in one step when small, else 8 per step
    # (pad batch so the output block satisfies the (8, 128) tiling rule).
    if B <= 8:
        bb = B
        b_pad = B
    else:
        bb = 8
        b_pad = ((B + bb - 1) // bb) * bb
        pad = b_pad - B
        if pad:
            a1_t = jnp.pad(a1_t, ((0, pad), (0, 0), (0, 0)))
            a2 = jnp.pad(a2, ((0, pad), (0, 0), (0, 0)))
    grid = (b_pad // bb,)

    # Elementwise path keeps exact PyTorch summation order for small clouds;
    # MXU path offloads the O(F*N^2) cross term for big ones.
    use_mxu = N >= 512

    kernel = functools.partial(_chamfer_kernel, bb=bb, use_mxu=use_mxu)

    out = pl.pallas_call(
        kernel,
        out_shape=jax.ShapeDtypeStruct((b_pad, 128), jnp.float32),
        grid_spec=pltpu.PrefetchScalarGridSpec(
            num_scalar_prefetch=0,
            grid=grid,
            in_specs=[
                pl.BlockSpec((bb, F, N), lambda gb: (gb, 0, 0)),  # a1_t
                pl.BlockSpec((bb, N, F), lambda gb: (gb, 0, 0)),  # a2
            ],
            out_specs=pl.BlockSpec((bb, 128), lambda gb: (gb, 0)),
        ),
        compiler_params=pltpu.CompilerParams(
            dimension_semantics=("parallel",),  # no cross-step deps -> megacore OK
        ),
    )(a1_t, a2)

    # Final reduction + scaling once, matching the reference's ordering.
    return jnp.sum(out[:B, 0]) / B * 100.0


def _reference(array1, array2):
    # Plain-JAX reference mirroring chamfer_distance_numpy.
    def per_batch(a1, a2):
        d = jnp.sum((a2[:, None, :] - a1[None, :, :]) ** 2, axis=-1)  # (N2, N1)
        av1 = jnp.mean(jnp.min(d, axis=1))
        av2 = jnp.mean(jnp.min(d, axis=0))
        return 0.5 * av1 + 0.5 * av2

    B = array1.shape[0]
    per = jax.vmap(per_batch)(array1, array2)
    return jnp.sum(per) / B * 100.0


if __name__ == "__main__":
    key = jax.random.PRNGKey(0)
    k1, k2 = jax.random.split(key)
    B, N, F = 2, 16, 3  # small point clouds: batch=2, 16 points, 3-D coords
    array1 = jax.random.normal(k1, (B, N, F), dtype=jnp.float32)
    array2 = jax.random.normal(k2, (B, N, F), dtype=jnp.float32)

    result = jax.block_until_ready(point_loss(array1, array2))
    ref = jax.block_until_ready(_reference(array1, array2))

    assert np.allclose(np.asarray(result), np.asarray(ref), rtol=1e-5, atol=1e-5), (
        result,
        ref,
    )
    print("KERNEL_OK")
</pallas_src>

<mosaic_0001>
module attributes {stable_mosaic.version = 11 : i64} {
  func.func @_chamfer_kernel(%arg0: i32, %arg1: memref<2x3x16xf32, #tpu.memory_space<vmem>>, %arg2: memref<2x16x3xf32, #tpu.memory_space<vmem>>, %arg3: memref<2x128xf32, #tpu.memory_space<vmem>>) attributes {dimension_semantics = [#tpu.dimension_semantics<parallel>], iteration_bounds = array<i64: 1>, scalar_prefetch = 0 : i64, scratch_operands = 0 : i64, tpu.core_type = #tpu.core_type<tc>, window_params = [{transform_indices = @transform_0, window_bounds = array<i64: 2, 3, 16>}, {transform_indices = @transform_1, window_bounds = array<i64: 2, 16, 3>}, {transform_indices = @transform_2, window_bounds = array<i64: 2, 128>}]} {
    %c0 = arith.constant 0 : index
    %c0_0 = arith.constant 0 : index
    %c0_1 = arith.constant 0 : index
    %0 = vector.load %arg1[%c0, %c0_0, %c0_1] : memref<2x3x16xf32, #tpu.memory_space<vmem>>, vector<1x3x16xf32>
    %1 = vector.shape_cast %0 : vector<1x3x16xf32> to vector<3x16xf32>
    %c0_2 = arith.constant 0 : index
    %c0_3 = arith.constant 0 : index
    %c0_4 = arith.constant 0 : index
    %2 = vector.load %arg2[%c0_2, %c0_3, %c0_4] : memref<2x16x3xf32, #tpu.memory_space<vmem>>, vector<1x16x3xf32>
    %3 = vector.shape_cast %2 : vector<1x16x3xf32> to vector<16x3xf32>
    %cst = arith.constant 0.000000e+00 : f32
    %4 = vector.broadcast %cst : f32 to vector<16x16xf32>
    %5 = vector.extract_strided_slice %3 {offsets = [0, 0], sizes = [16, 1], strides = [1, 1]} : vector<16x3xf32> to vector<16x1xf32>
    %6 = vector.extract_strided_slice %1 {offsets = [0, 0], sizes = [1, 16], strides = [1, 1]} : vector<3x16xf32> to vector<1x16xf32>
    %7 = vector.broadcast %5 : vector<16x1xf32> to vector<16x16xf32>
    %8 = vector.broadcast %6 : vector<1x16xf32> to vector<16x16xf32>
    %9 = arith.subf %7, %8 : vector<16x16xf32>
    %10 = arith.mulf %9, %9 : vector<16x16xf32>
    %11 = arith.addf %4, %10 : vector<16x16xf32>
    %12 = vector.extract_strided_slice %3 {offsets = [0, 1], sizes = [16, 1], strides = [1, 1]} : vector<16x3xf32> to vector<16x1xf32>
    %13 = vector.extract_strided_slice %1 {offsets = [1, 0], sizes = [1, 16], strides = [1, 1]} : vector<3x16xf32> to vector<1x16xf32>
    %14 = vector.broadcast %12 : vector<16x1xf32> to vector<16x16xf32>
    %15 = vector.broadcast %13 : vector<1x16xf32> to vector<16x16xf32>
    %16 = arith.subf %14, %15 : vector<16x16xf32>
    %17 = arith.mulf %16, %16 : vector<16x16xf32>
    %18 = arith.addf %11, %17 : vector<16x16xf32>
    %19 = vector.extract_strided_slice %3 {offsets = [0, 2], sizes = [16, 1], strides = [1, 1]} : vector<16x3xf32> to vector<16x1xf32>
    %20 = vector.extract_strided_slice %1 {offsets = [2, 0], sizes = [1, 16], strides = [1, 1]} : vector<3x16xf32> to vector<1x16xf32>
    %21 = vector.broadcast %19 : vector<16x1xf32> to vector<16x16xf32>
    %22 = vector.broadcast %20 : vector<1x16xf32> to vector<16x16xf32>
    %23 = arith.subf %21, %22 : vector<16x16xf32>
    %24 = arith.mulf %23, %23 : vector<16x16xf32>
    %25 = arith.addf %18, %24 : vector<16x16xf32>
    %cst_5 = arith.constant dense<0x7F800000> : vector<16xf32>
    %26 = vector.multi_reduction <minimumf>, %25, %cst_5 [1] : vector<16x16xf32> to vector<16xf32>
    %27 = vector.shape_cast %26 : vector<16xf32> to vector<16x1xf32>
    %28 = vector.shape_cast %27 : vector<16x1xf32> to vector<1x16x1xf32>
    %cst_6 = arith.constant dense<0.000000e+00> : vector<1xf32>
    %29 = vector.multi_reduction <add>, %28, %cst_6 [1, 2] : vector<1x16x1xf32> to vector<1xf32>
    %30 = vector.shape_cast %29 : vector<1xf32> to vector<1x1x1xf32>
    %31 = vector.extract %30[0, 0, 0] : f32 from vector<1x1x1xf32>
    %cst_7 = arith.constant 1.600000e+01 : f32
    %32 = arith.divf %31, %cst_7 : f32
    %cst_8 = arith.constant dense<0x7F800000> : vector<16xf32>
    %33 = vector.multi_reduction <minimumf>, %25, %cst_8 [0] : vector<16x16xf32> to vector<16xf32>
    %34 = vector.shape_cast %33 : vector<16xf32> to vector<1x16xf32>
    %35 = vector.shape_cast %34 : vector<1x16xf32> to vector<1x1x16xf32>
    %cst_9 = arith.constant dense<0.000000e+00> : vector<1xf32>
    %36 = vector.multi_reduction <add>, %35, %cst_9 [1, 2] : vector<1x1x16xf32> to vector<1xf32>
    %37 = vector.shape_cast %36 : vector<1xf32> to vector<1x1x1xf32>
    %38 = vector.extract %37[0, 0, 0] : f32 from vector<1x1x1xf32>
    %cst_10 = arith.constant 1.600000e+01 : f32
    %39 = arith.divf %38, %cst_10 : f32
    %cst_11 = arith.constant 5.000000e-01 : f32
    %40 = arith.mulf %cst_11, %32 : f32
    %cst_12 = arith.constant 5.000000e-01 : f32
    %41 = arith.mulf %cst_12, %39 : f32
    %42 = arith.addf %40, %41 : f32
    %43 = vector.broadcast %42 : f32 to vector<1x128xf32>
    %c1 = arith.constant 1 : index
    %c0_13 = arith.constant 0 : index
    %c0_14 = arith.constant 0 : index
    %44 = vector.load %arg1[%c1, %c0_13, %c0_14] : memref<2x3x16xf32, #tpu.memory_space<vmem>>, vector<1x3x16xf32>
    %45 = vector.shape_cast %44 : vector<1x3x16xf32> to vector<3x16xf32>
    %c1_15 = arith.constant 1 : index
    %c0_16 = arith.constant 0 : index
    %c0_17 = arith.constant 0 : index
    %46 = vector.load %arg2[%c1_15, %c0_16, %c0_17] : memref<2x16x3xf32, #tpu.memory_space<vmem>>, vector<1x16x3xf32>
    %47 = vector.shape_cast %46 : vector<1x16x3xf32> to vector<16x3xf32>
    %cst_18 = arith.constant 0.000000e+00 : f32
    %48 = vector.broadcast %cst_18 : f32 to vector<16x16xf32>
    %49 = vector.extract_strided_slice %47 {offsets = [0, 0], sizes = [16, 1], strides = [1, 1]} : vector<16x3xf32> to vector<16x1xf32>
    %50 = vector.extract_strided_slice %45 {offsets = [0, 0], sizes = [1, 16], strides = [1, 1]} : vector<3x16xf32> to vector<1x16xf32>
    %51 = vector.broadcast %49 : vector<16x1xf32> to vector<16x16xf32>
    %52 = vector.broadcast %50 : vector<1x16xf32> to vector<16x16xf32>
    %53 = arith.subf %51, %52 : vector<16x16xf32>
    %54 = arith.mulf %53, %53 : vector<16x16xf32>
    %55 = arith.addf %48, %54 : vector<16x16xf32>
    %56 = vector.extract_strided_slice %47 {offsets = [0, 1], sizes = [16, 1], strides = [1, 1]} : vector<16x3xf32> to vector<16x1xf32>
    %57 = vector.extract_strided_slice %45 {offsets = [1, 0], sizes = [1, 16], strides = [1, 1]} : vector<3x16xf32> to vector<1x16xf32>
    %58 = vector.broadcast %56 : vector<16x1xf32> to vector<16x16xf32>
    %59 = vector.broadcast %57 : vector<1x16xf32> to vector<16x16xf32>
    %60 = arith.subf %58, %59 : vector<16x16xf32>
    %61 = arith.mulf %60, %60 : vector<16x16xf32>
    %62 = arith.addf %55, %61 : vector<16x16xf32>
    %63 = vector.extract_strided_slice %47 {offsets = [0, 2], sizes = [16, 1], strides = [1, 1]} : vector<16x3xf32> to vector<16x1xf32>
    %64 = vector.extract_strided_slice %45 {offsets = [2, 0], sizes = [1, 16], strides = [1, 1]} : vector<3x16xf32> to vector<1x16xf32>
    %65 = vector.broadcast %63 : vector<16x1xf32> to vector<16x16xf32>
    %66 = vector.broadcast %64 : vector<1x16xf32> to vector<16x16xf32>
    %67 = arith.subf %65, %66 : vector<16x16xf32>
    %68 = arith.mulf %67, %67 : vector<16x16xf32>
    %69 = arith.addf %62, %68 : vector<16x16xf32>
    %cst_19 = arith.constant dense<0x7F800000> : vector<16xf32>
    %70 = vector.multi_reduction <minimumf>, %69, %cst_19 [1] : vector<16x16xf32> to vector<16xf32>
    %71 = vector.shape_cast %70 : vector<16xf32> to vector<16x1xf32>
    %72 = vector.shape_cast %71 : vector<16x1xf32> to vector<1x16x1xf32>
    %cst_20 = arith.constant dense<0.000000e+00> : vector<1xf32>
    %73 = vector.multi_reduction <add>, %72, %cst_20 [1, 2] : vector<1x16x1xf32> to vector<1xf32>
    %74 = vector.shape_cast %73 : vector<1xf32> to vector<1x1x1xf32>
    %75 = vector.extract %74[0, 0, 0] : f32 from vector<1x1x1xf32>
    %cst_21 = arith.constant 1.600000e+01 : f32
    %76 = arith.divf %75, %cst_21 : f32
    %cst_22 = arith.constant dense<0x7F800000> : vector<16xf32>
    %77 = vector.multi_reduction <minimumf>, %69, %cst_22 [0] : vector<16x16xf32> to vector<16xf32>
    %78 = vector.shape_cast %77 : vector<16xf32> to vector<1x16xf32>
    %79 = vector.shape_cast %78 : vector<1x16xf32> to vector<1x1x16xf32>
    %cst_23 = arith.constant dense<0.000000e+00> : vector<1xf32>
    %80 = vector.multi_reduction <add>, %79, %cst_23 [1, 2] : vector<1x1x16xf32> to vector<1xf32>
    %81 = vector.shape_cast %80 : vector<1xf32> to vector<1x1x1xf32>
    %82 = vector.extract %81[0, 0, 0] : f32 from vector<1x1x1xf32>
    %cst_24 = arith.constant 1.600000e+01 : f32
    %83 = arith.divf %82, %cst_24 : f32
    %cst_25 = arith.constant 5.000000e-01 : f32
    %84 = arith.mulf %cst_25, %76 : f32
    %cst_26 = arith.constant 5.000000e-01 : f32
    %85 = arith.mulf %cst_26, %83 : f32
    %86 = arith.addf %84, %85 : f32
    %87 = vector.broadcast %86 : f32 to vector<1x128xf32>
    %88 = tpu.concatenate %43, %87 in 0 : vector<1x128xf32>, vector<1x128xf32> -> vector<2x128xf32>
    %c0_27 = arith.constant 0 : index
    %c0_28 = arith.constant 0 : index
    %89 = vector.load %arg3[%c0_27, %c0_28] : memref<2x128xf32, #tpu.memory_space<vmem>>, vector<2x128xf32>
    tpu.vector_store %arg3[%c0_27, %c0_28], %88 {strides = array<i32>} : memref<2x128xf32, #tpu.memory_space<vmem>>, vector<2x128xf32>,
    return
  }
  func.func @transform_0(%arg0: i32) -> (i32, i32, i32) {
    %c0_i32 = arith.constant 0 : i32
    %c0_i32_0 = arith.constant 0 : i32
    %c0_i32_1 = arith.constant 0 : i32
    return %arg0, %c0_i32, %c0_i32_0 : i32, i32, i32
  }
  func.func @transform_1(%arg0: i32) -> (i32, i32, i32) {
    %c0_i32 = arith.constant 0 : i32
    %c0_i32_0 = arith.constant 0 : i32
    %c0_i32_1 = arith.constant 0 : i32
    return %arg0, %c0_i32, %c0_i32_0 : i32, i32, i32
  }
  func.func @transform_2(%arg0: i32) -> (i32, i32) {
    %c0_i32 = arith.constant 0 : i32
    %c0_i32_0 = arith.constant 0 : i32
    return %arg0, %c0_i32 : i32, i32
  }
}

</mosaic_0001>

<llo_original>
// kernel: tpu_custom_call.1
$region0: #{tpu_custom_call.1}
  #allocation0 [shape = 'u32[]', space=smem, size = 0x4, offset = 0x4, fixed_abs, tag = 'smem constant byte address 0x4 - core index']
  #allocation1 [shape = 'u32[72,128]{1,0:T(1,128)}', space=vmem, size = 0x9000, scoped, tag = 'internal scratch']
  %s0 = inlined_call_operand.vmem [shape: f32[2,3,16], index: 0, kind: input, shape index: {}]
  %s1 = inlined_call_operand.vmem [shape: f32[2,16,3], index: 1, kind: input, shape index: {}]
  %s2 = inlined_call_operand.hbm [shape: f32[2,128], index: 2, kind: output, shape index: {}]
  %s3 = sld [smem:[#allocation0]]
  $region18: #{tpu_custom_call.1} parent=0
    _
  %s5 = ssub.s32 1, %s3
  %s6 = scalar_select 0, %s5, %s3
  $region1: #{tpu_custom_call.1} parent=0
    #allocation2 [shape = 'u8[1024]{0}', space=vmem, size = 0x400, scoped, tag = 'output window, operand 0, single buffered']
    #allocation3 [shape = 's32[1]{0}', space=sflag, size = 0x4, scoped, tag = 'scoped memory for tpu_custom_call.1']
    %7 = vsyncpa [#allocation3], 0
    // Predicated region
    $region2: #{tpu_custom_call.1} parent=1 // pred_check
      _
    $region3: #{tpu_custom_call.1} parent=1 // pred_check_branch
      %9 = sbr.rel (0) target = $region5
    $region4: #{tpu_custom_call.1} parent=1 // pred_region
      _
    $region5: #{tpu_custom_call.1} parent=1 // pred_fallthru
      _
    // Predicated region
    $region6: #{tpu_custom_call.1} parent=1 // pred_check
      _
    $region7: #{tpu_custom_call.1} parent=1 // pred_check_branch
      %11 = sbr.rel (0) target = $region9
    $region8: #{tpu_custom_call.1} parent=1 // pred_region
      _
    $region9: #{tpu_custom_call.1} parent=1 // pred_fallthru
      _
    %v12 = vld [vmem:[%s0] sm:$0x7]
    %v13 = vld [vmem:[%s1] sm:$0xff]
    %v14 = vld [vmem:[%s1 + $0x8] sm:$0xff]
    %16 = vset.pattern.permute.xlu0 0
    %17 = vperm.xlu0 %16, %v13
    %v18 = vpop.permute.xlu0 %17
    %21 = vset.pattern.permute.xlu0 0
    %22 = vperm.xlu0 %21, %v14
    %v23 = vpop.permute.xlu0 %22
    %v25 = vperm.slane %v12, 0
    %v26 = vsub.f32 %v18, %v25
    %v27 = vsub.f32 %v23, %v25
    %v28 = vmul.f32 %v26, %v26
    %v29 = vmul.f32 %v27, %v27
    %v30 = vadd.f32 %v28, 0.0
    %v31 = vadd.f32 %v29, 0.0
    %32 = vset.pattern.permute.xlu0 1
    %33 = vperm.xlu0 %32, %v13
    %v34 = vpop.permute.xlu0 %33
    %36 = vset.pattern.permute.xlu0 1
    %37 = vperm.xlu0 %36, %v14
    %v38 = vpop.permute.xlu0 %37
    %v40 = vperm.slane %v12, 1
    %v41 = vsub.f32 %v34, %v40
    %v42 = vsub.f32 %v38, %v40
    %v43 = vmul.f32 %v41, %v41
    %v44 = vmul.f32 %v42, %v42
    %v45 = vadd.f32 %v30, %v43
    %v46 = vadd.f32 %v31, %v44
    %47 = vset.pattern.permute.xlu0 2
    %48 = vperm.xlu0 %47, %v13
    %v49 = vpop.permute.xlu0 %48
    %51 = vset.pattern.permute.xlu0 2
    %52 = vperm.xlu0 %51, %v14
    %v53 = vpop.permute.xlu0 %52
    %v55 = vperm.slane %v12, 2
    %v56 = vsub.f32 %v49, %v55
    %v57 = vsub.f32 %v53, %v55
    %v58 = vmul.f32 %v56, %v56
    %v59 = vmul.f32 %v57, %v57
    %v60 = vadd.f32 %v45, %v58
    %v61 = vadd.f32 %v46, %v59
    %vm62 = vcmask 130048
    %v63 = vsel %vm62, %v60, inf
    %64 = vmin.xlane.f32.xlu0 %v63
    %v65 = vpop.xlane.xlu0 %64
    %v66 = vsel %vm62, %v61, inf
    %67 = vmin.xlane.f32.xlu0 %v66
    %v68 = vpop.xlane.xlu0 %67
    %vm69 = vcmask 7168
    %v70 = vsel %vm69, %v65, 0.0
    %v71 = vsel %vm69, %v68, 0.0
    %v72 = vadd.f32 %v70, %v71
    %73 = vadd.xlane.f32.xlu0 %v72
    %v74 = vpop.xlane.xlu0 %73
    %v75 = vrot.slane %v74, 4
    %v76 = vadd.f32 %v74, %v75
    %v77 = vrot.slane %v76, 2
    %v78 = vadd.f32 %v76, %v77
    %v79 = vrot.slane %v78, 1
    %v80 = vadd.f32 %v78, %v79
    %s81 = vtos %v80
    %v82 = vrcp.pop 16.0
    %v83 = vmul.f32 16.0, %v82
    %v84 = vsub.f32 1.0, %v83
    %v85 = vmul.f32 %v82, %v84
    %v86 = vadd.f32 %v82, %v85
    %vm87 = vweird.f32 %v82
    %v88 = vsel %vm87, %v82, %v86
    %s89 = vtos %v88
    %s90 = smul.f32 %s81, %s89
    %v91 = vmin.f32 %v63, %v66
    %v92 = vrot.slane %v91, 4
    %v93 = vmin.f32 %v91, %v92
    %v94 = vrot.slane %v93, 2
    %v95 = vmin.f32 %v93, %v94
    %v96 = vrot.slane %v95, 1
    %v97 = vmin.f32 %v95, %v96
    %vm98 = vcmask 122880
    %v99 = vsel %vm98, %v97, 0.0
    %100 = vadd.xlane.f32.xlu0 %v99
    %v101 = vpop.xlane.xlu0 %100
    %v102 = vrot.slane %v101, 4
    %v103 = vadd.f32 %v101, %v102
    %v104 = vrot.slane %v103, 2
    %v105 = vadd.f32 %v103, %v104
    %v106 = vrot.slane %v105, 1
    %v107 = vadd.f32 %v105, %v106
    %s108 = vtos %v107
    %v109 = vrcp.pop 16.0
    %v110 = vmul.f32 16.0, %v109
    %v111 = vsub.f32 1.0, %v110
    %v112 = vmul.f32 %v109, %v111
    %v113 = vadd.f32 %v109, %v112
    %vm114 = vweird.f32 %v109
    %v115 = vsel %vm114, %v109, %v113
    %s116 = vtos %v115
    %s117 = smul.f32 %s108, %s116
    %s118 = smul.f32 %s90, 0.5
    %s119 = smul.f32 %s117, 0.5
    %s120 = sadd.f32 %s118, %s119
    %v121 = vstv %s120
    %s122 = scalar_lea.vmem %s0, 4
    %v123 = vld [vmem:[%s122] sm:$0x7]
    %s124 = scalar_lea.vmem %s1, 16
    %v125 = vld [vmem:[%s124] sm:$0xff]
    %v126 = vld [vmem:[%s124 + $0x8] sm:$0xff]
    %128 = vset.pattern.permute.xlu0 0
    %129 = vperm.xlu0 %128, %v125
    %v130 = vpop.permute.xlu0 %129
    %133 = vset.pattern.permute.xlu0 0
    %134 = vperm.xlu0 %133, %v126
    %v135 = vpop.permute.xlu0 %134
    %v137 = vperm.slane %v123, 0
    %v138 = vsub.f32 %v130, %v137
    %v139 = vsub.f32 %v135, %v137
    %v140 = vmul.f32 %v138, %v138
    %v141 = vmul.f32 %v139, %v139
    %v142 = vadd.f32 %v140, 0.0
    %v143 = vadd.f32 %v141, 0.0
    %144 = vset.pattern.permute.xlu0 1
    %145 = vperm.xlu0 %144, %v125
    %v146 = vpop.permute.xlu0 %145
    %148 = vset.pattern.permute.xlu0 1
    %149 = vperm.xlu0 %148, %v126
    %v150 = vpop.permute.xlu0 %149
    %v152 = vperm.slane %v123, 1
    %v153 = vsub.f32 %v146, %v152
    %v154 = vsub.f32 %v150, %v152
    %v155 = vmul.f32 %v153, %v153
    %v156 = vmul.f32 %v154, %v154
    %v157 = vadd.f32 %v142, %v155
    %v158 = vadd.f32 %v143, %v156
    %159 = vset.pattern.permute.xlu0 2
    %160 = vperm.xlu0 %159, %v125
    %v161 = vpop.permute.xlu0 %160
    %163 = vset.pattern.permute.xlu0 2
    %164 = vperm.xlu0 %163, %v126
    %v165 = vpop.permute.xlu0 %164
    %v167 = vperm.slane %v123, 2
    %v168 = vsub.f32 %v161, %v167
    %v169 = vsub.f32 %v165, %v167
    %v170 = vmul.f32 %v168, %v168
    %v171 = vmul.f32 %v169, %v169
    %v172 = vadd.f32 %v157, %v170
    %v173 = vadd.f32 %v158, %v171
    %v174 = vsel %vm62, %v172, inf
    %175 = vmin.xlane.f32.xlu0 %v174
    %v176 = vpop.xlane.xlu0 %175
    %v177 = vsel %vm62, %v173, inf
    %178 = vmin.xlane.f32.xlu0 %v177
    %v179 = vpop.xlane.xlu0 %178
    %v180 = vsel %vm69, %v176, 0.0
    %v181 = vsel %vm69, %v179, 0.0
    %v182 = vadd.f32 %v180, %v181
    %183 = vadd.xlane.f32.xlu0 %v182
    %v184 = vpop.xlane.xlu0 %183
    %v185 = vrot.slane %v184, 4
    %v186 = vadd.f32 %v184, %v185
    %v187 = vrot.slane %v186, 2
    %v188 = vadd.f32 %v186, %v187
    %v189 = vrot.slane %v188, 1
    %v190 = vadd.f32 %v188, %v189
    %s191 = vtos %v190
    %v192 = vrcp.pop 16.0
    %v193 = vmul.f32 16.0, %v192
    %v194 = vsub.f32 1.0, %v193
    %v195 = vmul.f32 %v192, %v194
    %v196 = vadd.f32 %v192, %v195
    %vm197 = vweird.f32 %v192
    %v198 = vsel %vm197, %v192, %v196
    %s199 = vtos %v198
    %s200 = smul.f32 %s191, %s199
    %v201 = vmin.f32 %v174, %v177
    %v202 = vrot.slane %v201, 4
    %v203 = vmin.f32 %v201, %v202
    %v204 = vrot.slane %v203, 2
    %v205 = vmin.f32 %v203, %v204
    %v206 = vrot.slane %v205, 1
    %v207 = vmin.f32 %v205, %v206
    %v208 = vsel %vm98, %v207, 0.0
    %209 = vadd.xlane.f32.xlu0 %v208
    %v210 = vpop.xlane.xlu0 %209
    %v211 = vrot.slane %v210, 4
    %v212 = vadd.f32 %v210, %v211
    %v213 = vrot.slane %v212, 2
    %v214 = vadd.f32 %v212, %v213
    %v215 = vrot.slane %v214, 1
    %v216 = vadd.f32 %v214, %v215
    %s217 = vtos %v216
    %v218 = vrcp.pop 16.0
    %v219 = vmul.f32 16.0, %v218
    %v220 = vsub.f32 1.0, %v219
    %v221 = vmul.f32 %v218, %v220
    %v222 = vadd.f32 %v218, %v221
    %vm223 = vweird.f32 %v218
    %v224 = vsel %vm223, %v218, %v222
    %s225 = vtos %v224
    %s226 = smul.f32 %s217, %s225
    %s227 = smul.f32 %s200, 0.5
    %s228 = smul.f32 %s226, 0.5
    %s229 = sadd.f32 %s227, %s228
    %v230 = vstv %s229
    %vm231 = vcmask 1040384
    %v232 = vsel %vm231, %v121, %v230
    %233 = vst [vmem:[#allocation2] sm:$0x3] %v232
    // Predicated region
    $region10: #{tpu_custom_call.1} parent=1 // pred_check
      _
    $region11: #{tpu_custom_call.1} parent=1 // pred_check_branch
      %235 = sbr.rel (0) target = $region13
    $region12: #{tpu_custom_call.1} parent=1 // pred_region
      %237 = vsyncadd [#allocation3], 0
      %s239 = sshll.u32 [#allocation2], 4
      %s240 = int_to_ptr.vmem [resolvable:$true] %s239
      %s241 = sshll.u32 %s2, 4
      %s242 = int_to_ptr.hbm [resolvable:$true] %s241
      %244 = dma.vmem_to_hbm [thread:$0]  %s240, 32, %s242, [#allocation3]
    $region13: #{tpu_custom_call.1} parent=1 // pred_fallthru
      _
    // Predicated region
    $region14: #{tpu_custom_call.1} parent=1 // pred_check
      _
    $region15: #{tpu_custom_call.1} parent=1 // pred_check_branch
      %246 = sbr.rel (0) target = $region17
    $region16: #{tpu_custom_call.1} parent=1 // pred_region
      %248 = dma.done [#allocation3], 32
    $region17: #{tpu_custom_call.1} parent=1 // pred_fallthru
      _
    %249 = vsyncpa [#allocation3], 1

</llo_original>
